<compile_context>
chip_gen: v7x
topology: tpu7x:2x2x1
jax: 0.10.0
libtpu: 0.0.40
codegen_flags: <defaults>
</compile_context>

<pallas_src>
import jax
import jax.numpy as jnp
from jax import lax
from jax.experimental import pallas as pl
from jax.experimental.pallas import tpu as pltpu


def _round_up(x, m):
    return ((x + m - 1) // m) * m


def actor_kernel(x_ref, w1_ref, w2_ref, w3t_ref, b12_ref, b3_ref, o_ref):
    # MXU operands in bf16, accumulate in f32 (no-op cast if x is already bf16).
    xb = x_ref[...].astype(jnp.bfloat16)                       # (TB, in)

    # fc1 + relu  (dropout is identity at inference)
    h1 = jnp.dot(xb, w1_ref[...], preferred_element_type=jnp.float32)
    h1 = jnp.maximum(h1 + b12_ref[0:1, :], 0.0)                # (TB, Hp) lane-dense

    # fc2 + relu
    h2 = jnp.dot(h1.astype(jnp.bfloat16), w2_ref[...],
                 preferred_element_type=jnp.float32)
    h2 = jnp.maximum(h2 + b12_ref[1:2, :], 0.0)                # (TB, Hp) lane-dense

    # fc3, emitted feature-major straight from the MXU:
    #   logits_T[a, t] = sum_k W3^T[a, k] * h2[t, k]
    lt = lax.dot_general(
        w3t_ref[...], h2.astype(jnp.bfloat16),
        dimension_numbers=(((1,), (1,)), ((), ())),
        preferred_element_type=jnp.float32)                    # (n_assets, TB)
    lt = lt + b3_ref[...]                                      # (n_assets, 1) lane-bcast

    # Numerically stable softmax over the feature (sublane) axis.
    # Everything here is fully lane-dense (TB lanes per row).
    m = jnp.max(lt, axis=0, keepdims=True)                     # (1, TB)
    e = jnp.exp(lt - m)                                        # (n_assets, TB)
    s = jnp.sum(e, axis=0, keepdims=True)                      # (1, TB)
    inv = pl.reciprocal(s)                                     # exact (approx=False)
    o_ref[...] = (e * inv).astype(o_ref.dtype)                 # dense vst


def _pick_tb(B, tb_max):
    """Batch-tile size. Small batches run as one full tile; larger batches are
    split so there are always >= 2 grid steps (both v7x TCs busy) with a
    128-multiple tile (lane-dense feature-major output store)."""
    if B <= 256:
        return B
    return min(tb_max, _round_up(pl.cdiv(B, 2), 128))


def actor_forward(x, params, *, tb_max=4096):
    """x: (B, input_size) f32 (or bf16). Returns (B, n_assets) softmax probs."""
    w1, w2, w3t, b12, b3 = params
    B, input_size = x.shape
    hp = w1.shape[1]
    n_assets = w3t.shape[0]

    TB = _pick_tb(B, tb_max)
    grid = (pl.cdiv(B, TB),)

    out_t = pl.pallas_call(
        actor_kernel,
        out_shape=jax.ShapeDtypeStruct((n_assets, B), jnp.float32),
        grid=grid,
        in_specs=[
            pl.BlockSpec((TB, input_size), lambda i: (i, 0)),   # x: streamed per tile
            pl.BlockSpec((input_size, hp), lambda i: (0, 0)),   # w1: VMEM-resident
            pl.BlockSpec((hp, hp), lambda i: (0, 0)),           # w2: VMEM-resident
            pl.BlockSpec((n_assets, hp), lambda i: (0, 0)),     # w3^T: VMEM-resident
            pl.BlockSpec((2, hp), lambda i: (0, 0)),            # packed b1,b2: resident
            pl.BlockSpec((n_assets, 1), lambda i: (0, 0)),      # b3 column: resident
        ],
        out_specs=pl.BlockSpec((n_assets, TB), lambda i: (0, i)),
        compiler_params=pltpu.CompilerParams(
            dimension_semantics=("parallel",),       # shard batch grid across TCs (v7x)
            vmem_limit_bytes=48 * 1024 * 1024,       # safe on v7x (64 MiB physical)
        ),
    )(x, w1, w2, w3t, b12, b3)

    # Tiny (n_assets, B) transpose back to batch-major; negligible vs input DMA.
    return out_t.T


def init_params(key, input_size, n_assets, hidden_size=64):
    """Deterministic synthetic init mimicking nn.Linear shapes.

    Weights are stored transposed vs PyTorch (in_features, out_features) and the
    hidden dim is zero-padded to a multiple of 128 (lane-dense elementwise work,
    MXU cost unchanged).  W3 is stored as W3^T (n_assets, hidden_p) for the
    feature-major third matmul.  b1/b2 are packed into one (2, hidden_p) array;
    b3 is a (n_assets, 1) column."""
    hp = max(128, _round_up(hidden_size, 128))
    ks = jax.random.split(key, 6)

    def linear(kw, kb, fan_in, fan_out):
        bound = 1.0 / jnp.sqrt(fan_in)
        w = jax.random.uniform(kw, (fan_in, fan_out), jnp.float32, -bound, bound)
        b = jax.random.uniform(kb, (fan_out,), jnp.float32, -bound, bound)
        return w, b

    w1, b1 = linear(ks[0], ks[1], input_size, hidden_size)
    w2, b2 = linear(ks[2], ks[3], hidden_size, hidden_size)
    w3, b3 = linear(ks[4], ks[5], hidden_size, n_assets)

    w1p = jnp.zeros((input_size, hp), jnp.float32).at[:, :hidden_size].set(w1)
    w2p = jnp.zeros((hp, hp), jnp.float32).at[:hidden_size, :hidden_size].set(w2)
    w3tp = jnp.zeros((n_assets, hp), jnp.float32).at[:, :hidden_size].set(w3.T)

    b12 = (jnp.zeros((2, hp), jnp.float32)
           .at[0, :hidden_size].set(b1)
           .at[1, :hidden_size].set(b2))
    b3c = b3.reshape(n_assets, 1)

    return (w1p.astype(jnp.bfloat16), w2p.astype(jnp.bfloat16),
            w3tp.astype(jnp.bfloat16), b12, b3c)


def actor_ref(x, params):
    """Pure-JAX reference (same bf16-operand matmul recipe, f32 elsewhere)."""
    w1, w2, w3t, b12, b3 = params
    h1 = jax.nn.relu(jnp.dot(x.astype(jnp.bfloat16), w1,
                             preferred_element_type=jnp.float32) + b12[0:1, :])
    h2 = jax.nn.relu(jnp.dot(h1.astype(jnp.bfloat16), w2,
                             preferred_element_type=jnp.float32) + b12[1:2, :])
    logits = jnp.dot(h2.astype(jnp.bfloat16), w3t.T,
                     preferred_element_type=jnp.float32) + b3[:, 0][None, :]
    return jax.nn.softmax(logits, axis=-1)


if __name__ == "__main__":
    key = jax.random.PRNGKey(0)
    k_x, k_p, k_big = jax.random.split(key, 3)

    input_size = 32
    n_assets = 8
    hidden_size = 64
    params = init_params(k_p, input_size, n_assets, hidden_size)

    # Small batch (single grid step, full-batch tile).
    batch = 4
    x = jax.random.normal(k_x, (batch, input_size), jnp.float32)
    out = jax.block_until_ready(actor_forward(x, params))
    ref = actor_ref(x, params)
    assert out.shape == (batch, n_assets)
    assert jnp.allclose(jnp.sum(out, axis=-1), 1.0, atol=1e-3)
    assert jnp.allclose(out, ref, atol=2e-3, rtol=2e-3)

    # Larger batch: 2 grid steps (TB=768), partial tail block, lane-dense stores.
    big_batch = 1500
    xb = jax.random.normal(k_big, (big_batch, input_size), jnp.float32)
    out_b = jax.block_until_ready(actor_forward(xb, params))
    ref_b = actor_ref(xb, params)
    assert out_b.shape == (big_batch, n_assets)
    assert jnp.allclose(jnp.sum(out_b, axis=-1), 1.0, atol=1e-3)
    assert jnp.allclose(out_b, ref_b, atol=2e-3, rtol=2e-3)

    print("KERNEL_OK")
</pallas_src>

<mosaic_0001>
module attributes {stable_mosaic.version = 11 : i64} {
  func.func @actor_kernel(%arg0: i32, %arg1: memref<4x32xf32, #tpu.memory_space<vmem>>, %arg2: memref<32x128xbf16, #tpu.memory_space<vmem>>, %arg3: memref<128x128xbf16, #tpu.memory_space<vmem>>, %arg4: memref<8x128xbf16, #tpu.memory_space<vmem>>, %arg5: memref<2x128xf32, #tpu.memory_space<vmem>>, %arg6: memref<8x1xf32, #tpu.memory_space<vmem>>, %arg7: memref<8x4xf32, #tpu.memory_space<vmem>>) attributes {dimension_semantics = [#tpu.dimension_semantics<parallel>], iteration_bounds = array<i64: 1>, scalar_prefetch = 0 : i64, scratch_operands = 0 : i64, tpu.core_type = #tpu.core_type<tc>, window_params = [{transform_indices = @transform_0, window_bounds = array<i64: 4, 32>}, {pipeline_mode = #tpu.pipeline_mode<synchronous>, transform_indices = @transform_1, window_bounds = array<i64: 32, 128>}, {pipeline_mode = #tpu.pipeline_mode<synchronous>, transform_indices = @transform_2, window_bounds = array<i64: 128, 128>}, {pipeline_mode = #tpu.pipeline_mode<synchronous>, transform_indices = @transform_3, window_bounds = array<i64: 8, 128>}, {pipeline_mode = #tpu.pipeline_mode<synchronous>, transform_indices = @transform_4, window_bounds = array<i64: 2, 128>}, {pipeline_mode = #tpu.pipeline_mode<synchronous>, transform_indices = @transform_5, window_bounds = array<i64: 8, 1>}, {transform_indices = @transform_6, window_bounds = array<i64: 8, 4>}]} {
    %c0 = arith.constant 0 : index
    %c0_0 = arith.constant 0 : index
    %0 = vector.load %arg1[%c0, %c0_0] : memref<4x32xf32, #tpu.memory_space<vmem>>, vector<4x32xf32>
    %1 = arith.truncf %0 : vector<4x32xf32> to vector<4x32xbf16>
    %c0_1 = arith.constant 0 : index
    %c0_2 = arith.constant 0 : index
    %2 = vector.load %arg2[%c0_1, %c0_2] : memref<32x128xbf16, #tpu.memory_space<vmem>>, vector<32x128xbf16>
    %cst = arith.constant dense<0.000000e+00> : vector<4x128xf32>
    %3 = tpu.matmul %1, %2, %cst {dimension_numbers = #tpu.dot_dimension_numbers<[1], [0], [0], [1], [0, 0, 1, 1], [], []>} : vector<4x32xbf16>, vector<32x128xbf16>, vector<4x128xf32> -> vector<4x128xf32>
    %c0_3 = arith.constant 0 : index
    %c0_4 = arith.constant 0 : index
    %4 = vector.load %arg5[%c0_3, %c0_4] : memref<2x128xf32, #tpu.memory_space<vmem>>, vector<1x128xf32>
    %5 = vector.broadcast %4 : vector<1x128xf32> to vector<4x128xf32>
    %6 = arith.addf %3, %5 : vector<4x128xf32>
    %cst_5 = arith.constant 0.000000e+00 : f32
    %7 = vector.broadcast %cst_5 : f32 to vector<4x128xf32>
    %8 = arith.maximumf %6, %7 : vector<4x128xf32>
    %9 = arith.truncf %8 : vector<4x128xf32> to vector<4x128xbf16>
    %c0_6 = arith.constant 0 : index
    %c0_7 = arith.constant 0 : index
    %10 = vector.load %arg3[%c0_6, %c0_7] : memref<128x128xbf16, #tpu.memory_space<vmem>>, vector<128x128xbf16>
    %cst_8 = arith.constant dense<0.000000e+00> : vector<4x128xf32>
    %11 = tpu.matmul %9, %10, %cst_8 {dimension_numbers = #tpu.dot_dimension_numbers<[1], [0], [0], [1], [0, 0, 1, 1], [], []>} : vector<4x128xbf16>, vector<128x128xbf16>, vector<4x128xf32> -> vector<4x128xf32>
    %c1 = arith.constant 1 : index
    %c0_9 = arith.constant 0 : index
    %12 = vector.load %arg5[%c1, %c0_9] : memref<2x128xf32, #tpu.memory_space<vmem>>, vector<1x128xf32>
    %13 = vector.broadcast %12 : vector<1x128xf32> to vector<4x128xf32>
    %14 = arith.addf %11, %13 : vector<4x128xf32>
    %cst_10 = arith.constant 0.000000e+00 : f32
    %15 = vector.broadcast %cst_10 : f32 to vector<4x128xf32>
    %16 = arith.maximumf %14, %15 : vector<4x128xf32>
    %c0_11 = arith.constant 0 : index
    %c0_12 = arith.constant 0 : index
    %17 = vector.load %arg4[%c0_11, %c0_12] : memref<8x128xbf16, #tpu.memory_space<vmem>>, vector<8x128xbf16>
    %18 = arith.truncf %16 : vector<4x128xf32> to vector<4x128xbf16>
    %cst_13 = arith.constant dense<0.000000e+00> : vector<8x4xf32>
    %19 = tpu.matmul %17, %18, %cst_13 {dimension_numbers = #tpu.dot_dimension_numbers<[1], [1], [0], [0], [0, 0, 1, 0], [], []>} : vector<8x128xbf16>, vector<4x128xbf16>, vector<8x4xf32> -> vector<8x4xf32>
    %c0_14 = arith.constant 0 : index
    %c0_15 = arith.constant 0 : index
    %20 = vector.load %arg6[%c0_14, %c0_15] : memref<8x1xf32, #tpu.memory_space<vmem>>, vector<8x1xf32>
    %21 = vector.broadcast %20 : vector<8x1xf32> to vector<8x4xf32>
    %22 = arith.addf %19, %21 : vector<8x4xf32>
    %cst_16 = arith.constant dense<0xFF800000> : vector<4xf32>
    %23 = vector.multi_reduction <maximumf>, %22, %cst_16 [0] : vector<8x4xf32> to vector<4xf32>
    %24 = vector.shape_cast %23 : vector<4xf32> to vector<1x4xf32>
    %25 = vector.broadcast %24 : vector<1x4xf32> to vector<8x4xf32>
    %26 = arith.subf %22, %25 : vector<8x4xf32>
    %27 = math.exp %26 : vector<8x4xf32>
    %cst_17 = arith.constant dense<0.000000e+00> : vector<4xf32>
    %28 = vector.multi_reduction <add>, %27, %cst_17 [0] : vector<8x4xf32> to vector<4xf32>
    %29 = vector.shape_cast %28 : vector<4xf32> to vector<1x4xf32>
    %30 = tpu.reciprocal %29 : vector<1x4xf32> -> vector<1x4xf32>
    %31 = vector.broadcast %30 : vector<1x4xf32> to vector<8x4xf32>
    %32 = arith.mulf %27, %31 : vector<8x4xf32>
    %c0_18 = arith.constant 0 : index
    %c0_19 = arith.constant 0 : index
    %33 = vector.load %arg7[%c0_18, %c0_19] : memref<8x4xf32, #tpu.memory_space<vmem>>, vector<8x4xf32>
    tpu.vector_store %arg7[%c0_18, %c0_19], %32 {strides = array<i32>} : memref<8x4xf32, #tpu.memory_space<vmem>>, vector<8x4xf32>,
    return
  }
  func.func @transform_0(%arg0: i32) -> (i32, i32) {
    %c0_i32 = arith.constant 0 : i32
    %c0_i32_0 = arith.constant 0 : i32
    return %arg0, %c0_i32 : i32, i32
  }
  func.func @transform_1(%arg0: i32) -> (i32, i32) {
    %c0_i32 = arith.constant 0 : i32
    %c0_i32_0 = arith.constant 0 : i32
    %c0_i32_1 = arith.constant 0 : i32
    return %c0_i32, %c0_i32_0 : i32, i32
  }
  func.func @transform_2(%arg0: i32) -> (i32, i32) {
    %c0_i32 = arith.constant 0 : i32
    %c0_i32_0 = arith.constant 0 : i32
    %c0_i32_1 = arith.constant 0 : i32
    return %c0_i32, %c0_i32_0 : i32, i32
  }
  func.func @transform_3(%arg0: i32) -> (i32, i32) {
    %c0_i32 = arith.constant 0 : i32
    %c0_i32_0 = arith.constant 0 : i32
    %c0_i32_1 = arith.constant 0 : i32
    return %c0_i32, %c0_i32_0 : i32, i32
  }
  func.func @transform_4(%arg0: i32) -> (i32, i32) {
    %c0_i32 = arith.constant 0 : i32
    %c0_i32_0 = arith.constant 0 : i32
    %c0_i32_1 = arith.constant 0 : i32
    return %c0_i32, %c0_i32_0 : i32, i32
  }
  func.func @transform_5(%arg0: i32) -> (i32, i32) {
    %c0_i32 = arith.constant 0 : i32
    %c0_i32_0 = arith.constant 0 : i32
    %c0_i32_1 = arith.constant 0 : i32
    return %c0_i32, %c0_i32_0 : i32, i32
  }
  func.func @transform_6(%arg0: i32) -> (i32, i32) {
    %c0_i32 = arith.constant 0 : i32
    %c0_i32_0 = arith.constant 0 : i32
    return %c0_i32, %arg0 : i32, i32
  }
}

</mosaic_0001>

<llo_original>
// kernel: tpu_custom_call.1
$region0: #{tpu_custom_call.1}
  #allocation0 [shape = 'u32[]', space=smem, size = 0x4, offset = 0x4, fixed_abs, tag = 'smem constant byte address 0x4 - core index']
  #allocation1 [shape = 'u32[144,128]{1,0:T(1,128)}', space=vmem, size = 0x12000, scoped, tag = 'internal scratch']
  %s0 = inlined_call_operand.vmem [shape: f32[4,32], index: 0, kind: input, shape index: {}]
  %s1 = inlined_call_operand.hbm [shape: bf16[32,128], index: 1, kind: input, shape index: {}]
  %s2 = inlined_call_operand.hbm [shape: bf16[128,128], index: 2, kind: input, shape index: {}]
  %s3 = inlined_call_operand.vmem [shape: bf16[8,128], index: 3, kind: input, shape index: {}]
  %s4 = inlined_call_operand.vmem [shape: f32[2,128], index: 4, kind: input, shape index: {}]
  %s5 = inlined_call_operand.vmem [shape: f32[8,1], index: 5, kind: input, shape index: {}]
  %s6 = inlined_call_operand.vmem [shape: f32[8,4], index: 6, kind: output, shape index: {}]
  %s7 = sld [smem:[#allocation0]]
  $region42: #{tpu_custom_call.1} parent=0
    _
  %s9 = ssub.s32 1, %s7
  %s10 = scalar_select 0, %s9, %s7
  $region1: #{tpu_custom_call.1} parent=0
    #allocation2 [shape = 'u8[8192]{0}', space=vmem, size = 0x2000, scoped, tag = 'input window, operand 1, single buffered']
    #allocation3 [shape = 's32[1]{0}', space=sflag, size = 0x4, scoped, tag = 'scoped memory for tpu_custom_call.1']
    #allocation4 [shape = 'u8[32768]{0}', space=vmem, size = 0x8000, scoped, tag = 'input window, operand 2, single buffered']
    #allocation5 [shape = 's32[1]{0}', space=sflag, size = 0x4, scoped, tag = 'scoped memory for tpu_custom_call.1']
    %11 = vsyncpa [#allocation3], 0
    %12 = vsyncpa [#allocation5], 0
    // Predicated region
    $region2: #{tpu_custom_call.1} parent=1 // pred_check
      _
    $region3: #{tpu_custom_call.1} parent=1 // pred_check_branch
      %14 = sbr.rel (0) target = $region5
    $region4: #{tpu_custom_call.1} parent=1 // pred_region
      _
    $region5: #{tpu_custom_call.1} parent=1 // pred_fallthru
      _
    // Predicated region
    $region6: #{tpu_custom_call.1} parent=1 // pred_check
      _
    $region7: #{tpu_custom_call.1} parent=1 // pred_check_branch
      %16 = sbr.rel (0) target = $region9
    $region8: #{tpu_custom_call.1} parent=1 // pred_region
      %s18 = ssub.s32 256, 256
      %19 = vsyncadd [#allocation3], %s18
      %s20 = sshll.u32 [#allocation2], 4
      %s21 = int_to_ptr.vmem [resolvable:$true] %s20
      %26 = dma.hbm_to_vmem [thread:$0]  %s1, 256, %s21, [#allocation3], 64, 64, 4
    $region9: #{tpu_custom_call.1} parent=1 // pred_fallthru
      _
    // Predicated region
    $region10: #{tpu_custom_call.1} parent=1 // pred_check
      _
    $region11: #{tpu_custom_call.1} parent=1 // pred_check_branch
      %28 = sbr.rel (0) target = $region13
    $region12: #{tpu_custom_call.1} parent=1 // pred_region
      %s30 = ssub.s32 1024, 1024
      %31 = vsyncadd [#allocation5], %s30
      %s32 = sshll.u32 [#allocation4], 4
      %s33 = int_to_ptr.vmem [resolvable:$true] %s32
      %38 = dma.hbm_to_vmem [thread:$0]  %s2, 1024, %s33, [#allocation5], 64, 64, 4
    $region13: #{tpu_custom_call.1} parent=1 // pred_fallthru
      _
    // Predicated region
    $region14: #{tpu_custom_call.1} parent=1 // pred_check
      _
    $region15: #{tpu_custom_call.1} parent=1 // pred_check_branch
      %40 = sbr.rel (0) target = $region17
    $region16: #{tpu_custom_call.1} parent=1 // pred_region
      _
    $region17: #{tpu_custom_call.1} parent=1 // pred_fallthru
      _
    // Predicated region
    $region18: #{tpu_custom_call.1} parent=1 // pred_check
      _
    $region19: #{tpu_custom_call.1} parent=1 // pred_check_branch
      %42 = sbr.rel (0) target = $region21
    $region20: #{tpu_custom_call.1} parent=1 // pred_region
      _
    $region21: #{tpu_custom_call.1} parent=1 // pred_fallthru
      _
    // Predicated region
    $region22: #{tpu_custom_call.1} parent=1 // pred_check
      _
    $region23: #{tpu_custom_call.1} parent=1 // pred_check_branch
      %44 = sbr.rel (0) target = $region25
    $region24: #{tpu_custom_call.1} parent=1 // pred_region
      _
    $region25: #{tpu_custom_call.1} parent=1 // pred_fallthru
      _
    // Predicated region
    $region26: #{tpu_custom_call.1} parent=1 // pred_check
      _
    $region27: #{tpu_custom_call.1} parent=1 // pred_check_branch
      %46 = sbr.rel (0) target = $region29
    $region28: #{tpu_custom_call.1} parent=1 // pred_region
      %47 = dma.done [#allocation3], 256
    $region29: #{tpu_custom_call.1} parent=1 // pred_fallthru
      _
    // Predicated region
    $region30: #{tpu_custom_call.1} parent=1 // pred_check
      _
    $region31: #{tpu_custom_call.1} parent=1 // pred_check_branch
      %49 = sbr.rel (0) target = $region33
    $region32: #{tpu_custom_call.1} parent=1 // pred_region
      %50 = dma.done [#allocation5], 1024
    $region33: #{tpu_custom_call.1} parent=1 // pred_fallthru
      _
    %v52 = vld [vmem:[%s0] sm:$0xf]
    %v53 = vpack.c.bf16 %v52, %v52
    %v54 = vld [vmem:[#allocation2] sm:$0xf]
    %v55 = vld [vmem:[#allocation2 + $0x4] sm:$0xf]
    %v56 = vld [vmem:[#allocation2 + $0x8] sm:$0xf]
    %v57 = vld [vmem:[#allocation2 + $0xc] sm:$0xf]
    %v58 = vld [vmem:[%s4] sm:$0x1]
    %v59 = vlaneseq
    %v60 = vshrl.u32 %v59, 7
    %v61 = vsub.s32 0, %v60
    %v62 = vrot.slane %v58, %v61
    %v67 = vunpack.c.l.b16 %v54
    %v68 = vunpack.c.l.b16 %v55
    %v69 = vunpack.c.l.b16 %v56
    %v70 = vunpack.c.l.b16 %v57
    %v71 = vpack.c.b16 %v68, %v67
    %v72 = vpack.c.b16 %v70, %v69
    %vm75 = vcmask 261120
    %v77 = vsel %vm75, %v53, 0
    %79 = vmatprep.subr.bf16.mxu0 0
    %80 = vmatpush1.bf16.msra.mxu0 %v71
    %81 = vmatprep.subr.bf16.mxu0 0
    %82 = vmatpush1.bf16.msra.mxu0 %v72
    %83 = vmatprep.subr.bf16.mxu0 0
    %84 = vmatpush1.bf16.msra.mxu0 0
    %85 = vmatprep.subr.bf16.mxu0 0
    %86 = vmatpush1.bf16.msra.mxu0 0
    %87 = vmatprep.subr.bf16.mxu0 0
    %88 = vmatpush1.bf16.msra.mxu0 0
    %89 = vmatprep.subr.bf16.mxu0 0
    %90 = vmatpush1.bf16.msra.mxu0 0
    %91 = vmatprep.subr.bf16.mxu0 0
    %92 = vmatpush1.bf16.msra.mxu0 0
    %93 = vmatprep.subr.bf16.mxu0 0
    %94 = vmatpush1.bf16.msra.mxu0 0
    %95 = vmatprep.subr.bf16.mxu0 0
    %96 = vmatpush1.bf16.msra.mxu0 0
    %97 = vmatprep.subr.bf16.mxu0 0
    %98 = vmatpush1.bf16.msra.mxu0 0
    %99 = vmatprep.subr.bf16.mxu0 0
    %100 = vmatpush1.bf16.msra.mxu0 0
    %101 = vmatprep.subr.bf16.mxu0 0
    %102 = vmatpush1.bf16.msra.mxu0 0
    %103 = vmatprep.subr.bf16.mxu0 0
    %104 = vmatpush1.bf16.msra.mxu0 0
    %105 = vmatprep.subr.bf16.mxu0 0
    %106 = vmatpush1.bf16.msra.mxu0 0
    %107 = vmatprep.subr.bf16.mxu0 0
    %108 = vmatpush1.bf16.msra.mxu0 0
    %109 = vmatprep.subr.bf16.mxu0 0
    %110 = vmatpush1.bf16.msra.mxu0 0
    %111 = vmatprep.mubr.bf16.mxu0 0
    %112 = vmatmul.mubr.bf16.gmra.mrb[0].mxu0 %v77
    %v113 = vpop.f32.mrb[0].mxu0
    %v114 = vadd.f32 %v62, %v113
    %v115 = vpop.f32.mrb[0].mxu0
    %v116 = vpop.f32.mrb[0].mxu0
    %v117 = vpop.f32.mrb[0].mxu0
    %118 = vdwg.mxu0
    %v119 = vmax.f32 %v114, 0.0
    %v120 = vpack.c.bf16 %v119, %v119
    %v121 = vld [vmem:[#allocation4] sm:$0xf]
    %v122 = vld [vmem:[#allocation4 + $0x4] sm:$0xf]
    %v123 = vld [vmem:[#allocation4 + $0x8] sm:$0xf]
    %v124 = vld [vmem:[#allocation4 + $0xc] sm:$0xf]
    %v125 = vld [vmem:[#allocation4 + $0x10] sm:$0xf]
    %v126 = vld [vmem:[#allocation4 + $0x14] sm:$0xf]
    %v127 = vld [vmem:[#allocation4 + $0x18] sm:$0xf]
    %v128 = vld [vmem:[#allocation4 + $0x1c] sm:$0xf]
    %v129 = vld [vmem:[#allocation4 + $0x20] sm:$0xf]
    %v130 = vld [vmem:[#allocation4 + $0x24] sm:$0xf]
    %v131 = vld [vmem:[#allocation4 + $0x28] sm:$0xf]
    %v132 = vld [vmem:[#allocation4 + $0x2c] sm:$0xf]
    %v133 = vld [vmem:[#allocation4 + $0x30] sm:$0xf]
    %v134 = vld [vmem:[#allocation4 + $0x34] sm:$0xf]
    %v135 = vld [vmem:[#allocation4 + $0x38] sm:$0xf]
    %v136 = vld [vmem:[#allocation4 + $0x3c] sm:$0xf]
    %v137 = vld [vmem:[%s4 + $0x1] sm:$0x1]
    %v138 = vlaneseq
    %v139 = vshrl.u32 %v138, 7
    %v140 = vsub.s32 0, %v139
    %v141 = vrot.slane %v137, %v140
    %v158 = vunpack.c.l.b16 %v121
    %v159 = vunpack.c.l.b16 %v122
    %v160 = vunpack.c.l.b16 %v123
    %v161 = vunpack.c.l.b16 %v124
    %v162 = vunpack.c.l.b16 %v125
    %v163 = vunpack.c.l.b16 %v126
    %v164 = vunpack.c.l.b16 %v127
    %v165 = vunpack.c.l.b16 %v128
    %v166 = vunpack.c.l.b16 %v129
    %v167 = vunpack.c.l.b16 %v130
    %v168 = vunpack.c.l.b16 %v131
    %v169 = vunpack.c.l.b16 %v132
    %v170 = vunpack.c.l.b16 %v133
    %v171 = vunpack.c.l.b16 %v134
    %v172 = vunpack.c.l.b16 %v135
    %v173 = vunpack.c.l.b16 %v136
    %v174 = vpack.c.b16 %v159, %v158
    %v175 = vpack.c.b16 %v161, %v160
    %v176 = vpack.c.b16 %v163, %v162
    %v177 = vpack.c.b16 %v165, %v164
    %v178 = vpack.c.b16 %v167, %v166
    %v179 = vpack.c.b16 %v169, %v168
    %v180 = vpack.c.b16 %v171, %v170
    %v181 = vpack.c.b16 %v173, %v172
    %190 = vmatprep.subr.bf16.mxu0 0
    %191 = vmatpush1.bf16.msra.mxu0 %v174
    %192 = vmatprep.subr.bf16.mxu0 0
    %193 = vmatpush1.bf16.msra.mxu0 %v175
    %194 = vmatprep.subr.bf16.mxu0 0
    %195 = vmatpush1.bf16.msra.mxu0 %v176
    %196 = vmatprep.subr.bf16.mxu0 0
    %197 = vmatpush1.bf16.msra.mxu0 %v177
    %198 = vmatprep.subr.bf16.mxu0 0
    %199 = vmatpush1.bf16.msra.mxu0 %v178
    %200 = vmatprep.subr.bf16.mxu0 0
    %201 = vmatpush1.bf16.msra.mxu0 %v179
    %202 = vmatprep.subr.bf16.mxu0 0
    %203 = vmatpush1.bf16.msra.mxu0 %v180
    %204 = vmatprep.subr.bf16.mxu0 0
    %205 = vmatpush1.bf16.msra.mxu0 %v181
    %206 = vmatprep.subr.bf16.mxu0 0
    %207 = vmatpush1.bf16.msra.mxu0 0
    %208 = vmatprep.subr.bf16.mxu0 0
    %209 = vmatpush1.bf16.msra.mxu0 0
    %210 = vmatprep.subr.bf16.mxu0 0
    %211 = vmatpush1.bf16.msra.mxu0 0
    %212 = vmatprep.subr.bf16.mxu0 0
    %213 = vmatpush1.bf16.msra.mxu0 0
    %214 = vmatprep.subr.bf16.mxu0 0
    %215 = vmatpush1.bf16.msra.mxu0 0
    %216 = vmatprep.subr.bf16.mxu0 0
    %217 = vmatpush1.bf16.msra.mxu0 0
    %218 = vmatprep.subr.bf16.mxu0 0
    %219 = vmatpush1.bf16.msra.mxu0 0
    %220 = vmatprep.subr.bf16.mxu0 0
    %221 = vmatpush1.bf16.msra.mxu0 0
    %222 = vmatprep.mubr.bf16.mxu0 0
    %223 = vmatmul.mubr.bf16.gmra.mrb[0].mxu0 %v120
    %v224 = vpop.f32.mrb[0].mxu0
    %v225 = vadd.f32 %v141, %v224
    %v226 = vpop.f32.mrb[0].mxu0
    %v227 = vpop.f32.mrb[0].mxu0
    %v228 = vpop.f32.mrb[0].mxu0
    %229 = vdwg.mxu0
    %v230 = vmax.f32 %v225, 0.0
    %v231 = vld [vmem:[%s3] sm:$0xf]
    %v232 = vpack.c.bf16 %v230, %v230
    %v233 = vld [vmem:[%s5] sm:$0xff]
    %235 = vset.pattern.permute.xlu0 0
    %236 = vperm.xlu0 %235, %v233
    %v237 = vpop.permute.xlu0 %236
    %239 = vmatprep.subr.bf16.mxu0 0
    %240 = vmatpush1.bf16.xpose.msra.mxu0 %v232
    %241 = vmatprep.subr.bf16.mxu0 0
    %242 = vmatpush1.bf16.xpose.msra.mxu0 0
    %243 = vmatprep.subr.bf16.mxu0 0
    %244 = vmatpush1.bf16.xpose.msra.mxu0 0
    %245 = vmatprep.subr.bf16.mxu0 0
    %246 = vmatpush1.bf16.xpose.msra.mxu0 0
    %247 = vmatprep.subr.bf16.mxu0 0
    %248 = vmatpush1.bf16.xpose.msra.mxu0 0
    %249 = vmatprep.subr.bf16.mxu0 0
    %250 = vmatpush1.bf16.xpose.msra.mxu0 0
    %251 = vmatprep.subr.bf16.mxu0 0
    %252 = vmatpush1.bf16.xpose.msra.mxu0 0
    %253 = vmatprep.subr.bf16.mxu0 0
    %254 = vmatpush1.bf16.xpose.msra.mxu0 0
    %255 = vmatprep.subr.bf16.mxu0 0
    %256 = vmatpush1.bf16.xpose.msra.mxu0 0
    %257 = vmatprep.subr.bf16.mxu0 0
    %258 = vmatpush1.bf16.xpose.msra.mxu0 0
    %259 = vmatprep.subr.bf16.mxu0 0
    %260 = vmatpush1.bf16.xpose.msra.mxu0 0
    %261 = vmatprep.subr.bf16.mxu0 0
    %262 = vmatpush1.bf16.xpose.msra.mxu0 0
    %263 = vmatprep.subr.bf16.mxu0 0
    %264 = vmatpush1.bf16.xpose.msra.mxu0 0
    %265 = vmatprep.subr.bf16.mxu0 0
    %266 = vmatpush1.bf16.xpose.msra.mxu0 0
    %267 = vmatprep.subr.bf16.mxu0 0
    %268 = vmatpush1.bf16.xpose.msra.mxu0 0
    %269 = vmatprep.subr.bf16.mxu0 0
    %270 = vmatpush1.bf16.xpose.msra.mxu0 0
    %271 = vmatprep.mubr.bf16.mxu0 0
    %272 = vmatmul.mubr.bf16.gmra.mrb[0].mxu0 %v231
    %v273 = vpop.f32.mrb[0].mxu0
    %v274 = vadd.f32 %v237, %v273
    %v275 = vpop.f32.mrb[0].mxu0
    %v276 = vpop.f32.mrb[0].mxu0
    %v277 = vpop.f32.mrb[0].mxu0
    %278 = vdwg.mxu0
    %vm279 = vcmask 31744
    %v280 = vsel %vm279, %v274, -inf
    %v281 = vrot.slane %v280, 4
    %v282 = vmax.f32 %v280, %v281
    %v283 = vrot.slane %v282, 2
    %v284 = vmax.f32 %v282, %v283
    %v285 = vrot.slane %v284, 1
    %v286 = vmax.f32 %v284, %v285
    %v287 = vsub.f32 %v274, %v286
    %v288 = vmul.f32 %v287, 1.442695
    %v289 = vpow.pop %v288
    %v290 = vsel %vm279, %v289, 0.0
    %v291 = vrot.slane %v290, 4
    %v292 = vadd.f32 %v290, %v291
    %v293 = vrot.slane %v292, 2
    %v294 = vadd.f32 %v292, %v293
    %v295 = vrot.slane %v294, 1
    %v296 = vadd.f32 %v294, %v295
    %v297 = vrcp.pop %v296
    %v298 = vmul.f32 %v289, %v297
    %299 = vst.msk [vmem:[%s6] sm:$0xff] %vm279, %v298
    // Predicated region
    $region34: #{tpu_custom_call.1} parent=1 // pred_check
      _
    $region35: #{tpu_custom_call.1} parent=1 // pred_check_branch
      %301 = sbr.rel (0) target = $region37
    $region36: #{tpu_custom_call.1} parent=1 // pred_region
      _
    $region37: #{tpu_custom_call.1} parent=1 // pred_fallthru
      _
    // Predicated region
    $region38: #{tpu_custom_call.1} parent=1 // pred_check
      _
    $region39: #{tpu_custom_call.1} parent=1 // pred_check_branch
      %303 = sbr.rel (0) target = $region41
    $region40: #{tpu_custom_call.1} parent=1 // pred_region
      _
    $region41: #{tpu_custom_call.1} parent=1 // pred_fallthru
      _
    %304 = vsyncpa [#allocation3], 1
    %305 = vsyncpa [#allocation5], 1

</llo_original>
